<compile_context>
chip_gen: v7x
topology: tpu7x:2x2x1
jax: 0.10.0
libtpu: 0.0.40
codegen_flags: <defaults>
</compile_context>

<pallas_src>
import math

import numpy as np
import jax
import jax.numpy as jnp
from jax.experimental import pallas as pl
from jax.experimental.pallas import tpu as pltpu


# ---------------------------------------------------------------------------
# Host-side coefficient construction (glue, not the hot path)
# ---------------------------------------------------------------------------
def _adaptive_avg_pool_matrix(in_size, out_size):
    """A (out, in) such that A @ v == torch AdaptiveAvgPool1d(v, out)."""
    A = np.zeros((out_size, in_size), np.float32)
    for i in range(out_size):
        start = (i * in_size) // out_size
        end = math.ceil((i + 1) * in_size / out_size)
        A[i, start:end] = 1.0 / (end - start)
    return A


def _bilinear_upsample_matrix(out_size, in_size):
    """U (out, in) reproducing torch F.interpolate(mode='bilinear',
    align_corners=False) along one axis."""
    U = np.zeros((out_size, in_size), np.float32)
    scale = in_size / out_size
    for h in range(out_size):
        src = (h + 0.5) * scale - 0.5
        src = max(src, 0.0)
        i0 = min(int(math.floor(src)), in_size - 1)
        i1 = min(i0 + 1, in_size - 1)
        lam = src - i0
        U[h, i0] += 1.0 - lam
        U[h, i1] += lam
    return U


def _pick_hw_tile(HW, cap=1024):
    """Largest multiple-of-128 divisor of HW up to `cap`; full HW if small."""
    if HW <= cap:
        return HW
    t = (cap // 128) * 128
    while t >= 128:
        if HW % t == 0:
            return t
        t -= 128
    return HW   # TODO(synk): pad HW to a multiple of 128 instead of giving up


# ---------------------------------------------------------------------------
# Pallas kernels
# ---------------------------------------------------------------------------
def _pool_kernel(x_ref, acat_ref, p_ref):
    # x_ref   : (C, hw_tile)   f32   (batch dim squeezed)
    # acat_ref: (hw_tile, Stot) bf16  stacked pooling operators (transposed)
    # p_ref   : (C, Stot)      f32   accumulator resident across the hw axis
    part = jnp.dot(x_ref[...].astype(jnp.bfloat16), acat_ref[...],
                   preferred_element_type=jnp.float32)

    @pl.when(pl.program_id(1) == 0)
    def _():
        p_ref[...] = part

    @pl.when(pl.program_id(1) > 0)
    def _():
        p_ref[...] += part


def _psp_kernel(x_ref, pexp_ref, ucat_ref, wid_ref, wpyr_ref, b_ref,
                o_ref, t_ref):
    # x_ref   : (C, hw_tile)       f32   identity branch input tile
    # pexp_ref: (S*C, Stot)        bf16  block-diagonal expanded pooled feats
    # ucat_ref: (Stot, hw_tile)    bf16  stacked upsample operators (transposed)
    # wid_ref : (f_tile, C)        bf16  bottleneck cols for the identity branch
    # wpyr_ref: (f_tile, S*C)      bf16  folded (W_b,s @ W_s) pyramid weights
    # b_ref   : (f_tile, 1)        f32
    # o_ref   : (f_tile, hw_tile)  out dtype
    # t_ref   : (f_tile, Stot)     bf16  VMEM scratch, hoisted across hw tiles

    # T = concat_s (W_b,s @ W_s) @ pooled_s — independent of the hw tile, so
    # compute it once per (n, f) at the first hw step and reuse.
    @pl.when(pl.program_id(2) == 0)
    def _():
        t_ref[...] = jnp.dot(wpyr_ref[...], pexp_ref[...],
                             preferred_element_type=jnp.float32
                             ).astype(t_ref.dtype)

    x = x_ref[...].astype(jnp.bfloat16)
    acc = jnp.dot(wid_ref[...], x, preferred_element_type=jnp.float32)
    acc = acc + jnp.dot(t_ref[...], ucat_ref[...],
                        preferred_element_type=jnp.float32)
    o_ref[...] = jnp.maximum(acc + b_ref[...], 0.0).astype(o_ref.dtype)


# ---------------------------------------------------------------------------
# Wrapper
# ---------------------------------------------------------------------------
def psp_forward(x_nchw, params, sizes=(1, 2, 3, 6), out_dtype=jnp.bfloat16):
    N, C, H, W = x_nchw.shape
    HW = H * W
    S = len(sizes)
    F = params["bottleneck_w"].shape[0]

    # --- Small separable spatial operators ----------------------------------
    a_blocks, u_blocks, ks, offs = [], [], [], []
    off = 0
    for s in sizes:
        Ah = _adaptive_avg_pool_matrix(H, s)
        Aw = _adaptive_avg_pool_matrix(W, s)
        Uh = _bilinear_upsample_matrix(H, s)
        Uw = _bilinear_upsample_matrix(W, s)
        a_blocks.append(np.kron(Ah, Aw))          # (s*s, HW)  pooling operator
        u_blocks.append(np.kron(Uh, Uw).T)        # (s*s, HW)  upsample operator^T
        ks.append(s * s)
        offs.append(off)
        off += s * s
    stot = off                                                        # sum s^2
    acat_t = jnp.asarray(np.concatenate(a_blocks, 0).T, jnp.bfloat16)  # (HW, Stot)
    ucat = jnp.asarray(np.concatenate(u_blocks, 0), jnp.bfloat16)      # (Stot, HW)

    # Block-diagonal mask selecting pooled columns of branch s for weight rows s.
    mask_np = np.zeros((S * C, stot), np.float32)
    for s in range(S):
        mask_np[s * C:(s + 1) * C, offs[s]:offs[s] + ks[s]] = 1.0
    mask = jnp.asarray(mask_np)

    # --- Fold the bias-free per-stage 1x1 convs into the bottleneck weight ---
    # PyTorch cat order is [stage_1(x), ..., stage_S(x), x] (identity LAST),
    # so bottleneck_w column blocks 0..S-1 are the stage branches, block S is x.
    wb = params["bottleneck_w"].astype(jnp.float32)                   # (F, (S+1)*C)
    wst = params["stage_w"].astype(jnp.float32)                       # (S, C, C)
    wpyr = jnp.concatenate([wb[:, s * C:(s + 1) * C] @ wst[s] for s in range(S)],
                           axis=1).astype(jnp.bfloat16)               # (F, S*C)
    wid = wb[:, S * C:(S + 1) * C].astype(jnp.bfloat16)               # (F, C)
    bias = params["bottleneck_b"].reshape(F, 1).astype(jnp.float32)   # (F, 1)

    # Channels-major f32 view of x (pure reshape, no cast, no transpose).
    x_cm = x_nchw.reshape(N, C, HW)                                   # (N, C, HW)

    hw_tile = _pick_hw_tile(HW)
    n_hw = HW // hw_tile
    # F split only pays off on v7x megacore when the batch alone cannot feed
    # both TensorCores; on single-TC chips it is pure per-step overhead.
    nf = 2 if (N == 1 and F % 256 == 0) else 1
    f_tile = F // nf

    # --- Pass 1: all pyramid pools, (C, HW) @ (HW, Stot), tiled over HW ------
    pooled = pl.pallas_call(
        _pool_kernel,
        out_shape=jax.ShapeDtypeStruct((N, C, stot), jnp.float32),
        grid_spec=pltpu.PrefetchScalarGridSpec(
            num_scalar_prefetch=0,
            grid=(N, n_hw),
            in_specs=[
                pl.BlockSpec((pl.Squeezed(), C, hw_tile), lambda n, h: (n, 0, h)),
                pl.BlockSpec((hw_tile, stot), lambda n, h: (h, 0)),
            ],
            out_specs=pl.BlockSpec((pl.Squeezed(), C, stot), lambda n, h: (n, 0, 0)),
        ),
        compiler_params=pltpu.CompilerParams(
            dimension_semantics=("parallel", "arbitrary")),
    )(x_cm, acat_t)

    # Tiny glue (N * S*C * Stot elems): present pooled as a block-diagonal
    # operand so the in-kernel branch fold is a single matmul.
    p_exp = (jnp.tile(pooled, (1, S, 1)) * mask[None, :, :]).astype(jnp.bfloat16)

    # --- Pass 2: fold + upsample + identity + bias + ReLU, tiled over F, HW --
    out_cm = pl.pallas_call(
        _psp_kernel,
        out_shape=jax.ShapeDtypeStruct((N, F, HW), out_dtype),
        grid_spec=pltpu.PrefetchScalarGridSpec(
            num_scalar_prefetch=0,
            grid=(N, nf, n_hw),
            in_specs=[
                pl.BlockSpec((pl.Squeezed(), C, hw_tile), lambda n, f, h: (n, 0, h)),
                pl.BlockSpec((pl.Squeezed(), S * C, stot), lambda n, f, h: (n, 0, 0)),
                pl.BlockSpec((stot, hw_tile), lambda n, f, h: (0, h)),
                pl.BlockSpec((f_tile, C), lambda n, f, h: (f, 0)),
                pl.BlockSpec((f_tile, S * C), lambda n, f, h: (f, 0)),
                pl.BlockSpec((f_tile, 1), lambda n, f, h: (f, 0)),
            ],
            out_specs=pl.BlockSpec((pl.Squeezed(), f_tile, hw_tile),
                                   lambda n, f, h: (n, f, h)),
            scratch_shapes=[pltpu.VMEM((f_tile, stot), jnp.bfloat16)],
        ),
        compiler_params=pltpu.CompilerParams(
            dimension_semantics=("parallel", "parallel", "arbitrary")),
    )(x_cm, p_exp, ucat, wid, wpyr, bias)

    return out_cm.reshape(N, F, H, W)


# ---------------------------------------------------------------------------
# Pure-JAX reference (mirrors the PyTorch forward, all f32) and param init
# ---------------------------------------------------------------------------
def psp_reference(x_nchw, params, sizes):
    N, C, H, W = x_nchw.shape
    HW = H * W
    x = x_nchw.reshape(N, C, HW).astype(jnp.float32)
    branches = []
    for s_idx, s in enumerate(sizes):
        A = jnp.asarray(np.kron(_adaptive_avg_pool_matrix(H, s),
                                _adaptive_avg_pool_matrix(W, s)))   # (k, HW)
        U = jnp.asarray(np.kron(_bilinear_upsample_matrix(H, s),
                                _bilinear_upsample_matrix(W, s)))   # (HW, k)
        pooled = jnp.einsum('nch,kh->nck', x, A)
        conv = jnp.einsum('dc,nck->ndk', params["stage_w"][s_idx], pooled)
        branches.append(jnp.einsum('ndk,hk->ndh', conv, U))
    branches.append(x)                                              # identity LAST
    cat = jnp.concatenate(branches, axis=1)                         # (N, (S+1)C, HW)
    out = (jnp.einsum('fc,nch->nfh', params["bottleneck_w"], cat)
           + params["bottleneck_b"][None, :, None])
    return jax.nn.relu(out).reshape(N, -1, H, W)


def init_params(key, features, out_features, sizes):
    S = len(sizes)
    keys = jax.random.split(key, S + 2)
    stage_w = jnp.stack(
        [jax.random.normal(keys[i], (features, features), jnp.float32)
         / math.sqrt(features) for i in range(S)], 0)          # (S, C, C), no bias
    cin = features * (S + 1)
    bottleneck_w = (jax.random.normal(keys[S], (out_features, cin), jnp.float32)
                    / math.sqrt(cin))                          # (F, (S+1)*C)
    bottleneck_b = jax.random.normal(keys[S + 1], (out_features,),
                                     jnp.float32) * 0.01       # (F,)
    return {"stage_w": stage_w,
            "bottleneck_w": bottleneck_w,
            "bottleneck_b": bottleneck_b}


if __name__ == "__main__":
    key = jax.random.PRNGKey(0)
    kx, kp = jax.random.split(key)

    N, C, H, W = 2, 4, 16, 16
    out_features = 1024
    sizes = (1, 2, 3, 6)

    x = jax.random.normal(kx, (N, C, H, W), jnp.float32)       # PyTorch NCHW input
    params = init_params(kp, C, out_features, sizes)

    y = psp_forward(x, params, sizes)
    jax.block_until_ready(y)
    assert y.shape == (N, out_features, H, W)
    assert bool(jnp.all(y >= 0.0))                             # ReLU output

    # Loose tolerance: kernel runs in bf16 with f32 accumulation vs f32 ref.
    ref = psp_reference(x, params, sizes)
    np.testing.assert_allclose(np.asarray(y, np.float32), np.asarray(ref),
                               rtol=0.1, atol=0.1)
    print("KERNEL_OK")
</pallas_src>

<mosaic_0001>
module attributes {stable_mosaic.version = 11 : i64} {
  func.func @_pool_kernel(%arg0: i32, %arg1: i32, %arg2: memref<1x4x256xf32, #tpu.memory_space<vmem>>, %arg3: memref<256x50xbf16, #tpu.memory_space<vmem>>, %arg4: memref<1x4x50xf32, #tpu.memory_space<vmem>>) attributes {dimension_semantics = [#tpu.dimension_semantics<parallel>, #tpu.dimension_semantics<arbitrary>], iteration_bounds = array<i64: 2, 1>, scalar_prefetch = 0 : i64, scratch_operands = 0 : i64, tpu.core_type = #tpu.core_type<tc>, window_params = [{transform_indices = @transform_0, window_bounds = array<i64: 1, 4, 256>}, {transform_indices = @transform_1, window_bounds = array<i64: 256, 50>}, {transform_indices = @transform_2, window_bounds = array<i64: 1, 4, 50>}]} {
    %c0 = arith.constant 0 : index
    %c0_0 = arith.constant 0 : index
    %c0_1 = arith.constant 0 : index
    %0 = vector.load %arg2[%c0, %c0_0, %c0_1] : memref<1x4x256xf32, #tpu.memory_space<vmem>>, vector<1x4x256xf32>
    %1 = vector.shape_cast %0 : vector<1x4x256xf32> to vector<4x256xf32>
    %2 = arith.truncf %1 : vector<4x256xf32> to vector<4x256xbf16>
    %c0_2 = arith.constant 0 : index
    %c0_3 = arith.constant 0 : index
    %3 = vector.load %arg3[%c0_2, %c0_3] : memref<256x50xbf16, #tpu.memory_space<vmem>>, vector<256x50xbf16>
    %cst = arith.constant dense<0.000000e+00> : vector<4x50xf32>
    %4 = tpu.matmul %2, %3, %cst {dimension_numbers = #tpu.dot_dimension_numbers<[1], [0], [0], [1], [0, 0, 1, 1], [], []>} : vector<4x256xbf16>, vector<256x50xbf16>, vector<4x50xf32> -> vector<4x50xf32>
    %c0_i32 = arith.constant 0 : i32
    %5 = arith.cmpi eq, %arg1, %c0_i32 : i32
    %6 = arith.extui %5 : i1 to i32
    %c0_i32_4 = arith.constant 0 : i32
    %7 = arith.cmpi ne, %6, %c0_i32_4 : i32
    scf.if %7 {
      %c0_7 = arith.constant 0 : index
      %c0_8 = arith.constant 0 : index
      %c0_9 = arith.constant 0 : index
      %11 = vector.load %arg4[%c0_7, %c0_8, %c0_9] : memref<1x4x50xf32, #tpu.memory_space<vmem>>, vector<1x4x50xf32>
      %12 = vector.shape_cast %11 : vector<1x4x50xf32> to vector<4x50xf32>
      %13 = vector.shape_cast %4 : vector<4x50xf32> to vector<1x4x50xf32>
      tpu.vector_store %arg4[%c0_7, %c0_8, %c0_9], %13 {strides = array<i32>} : memref<1x4x50xf32, #tpu.memory_space<vmem>>, vector<1x4x50xf32>,
    } else {
    }
    %c0_i32_5 = arith.constant 0 : i32
    %8 = arith.cmpi sgt, %arg1, %c0_i32_5 : i32
    %9 = arith.extui %8 : i1 to i32
    %c0_i32_6 = arith.constant 0 : i32
    %10 = arith.cmpi ne, %9, %c0_i32_6 : i32
    scf.if %10 {
      %c0_7 = arith.constant 0 : index
      %c0_8 = arith.constant 0 : index
      %c0_9 = arith.constant 0 : index
      %11 = vector.load %arg4[%c0_7, %c0_8, %c0_9] : memref<1x4x50xf32, #tpu.memory_space<vmem>>, vector<1x4x50xf32>
      %12 = vector.shape_cast %11 : vector<1x4x50xf32> to vector<4x50xf32>
      %13 = arith.addf %12, %4 : vector<4x50xf32>
      %c0_10 = arith.constant 0 : index
      %c0_11 = arith.constant 0 : index
      %c0_12 = arith.constant 0 : index
      %14 = vector.load %arg4[%c0_10, %c0_11, %c0_12] : memref<1x4x50xf32, #tpu.memory_space<vmem>>, vector<1x4x50xf32>
      %15 = vector.shape_cast %14 : vector<1x4x50xf32> to vector<4x50xf32>
      %16 = vector.shape_cast %13 : vector<4x50xf32> to vector<1x4x50xf32>
      tpu.vector_store %arg4[%c0_10, %c0_11, %c0_12], %16 {strides = array<i32>} : memref<1x4x50xf32, #tpu.memory_space<vmem>>, vector<1x4x50xf32>,
    } else {
    }
    return
  }
  func.func @transform_0(%arg0: i32, %arg1: i32) -> (i32, i32, i32) {
    %c0_i32 = arith.constant 0 : i32
    %c0_i32_0 = arith.constant 0 : i32
    return %arg0, %c0_i32, %arg1 : i32, i32, i32
  }
  func.func @transform_1(%arg0: i32, %arg1: i32) -> (i32, i32) {
    %c0_i32 = arith.constant 0 : i32
    %c0_i32_0 = arith.constant 0 : i32
    return %arg1, %c0_i32 : i32, i32
  }
  func.func @transform_2(%arg0: i32, %arg1: i32) -> (i32, i32, i32) {
    %c0_i32 = arith.constant 0 : i32
    %c0_i32_0 = arith.constant 0 : i32
    %c0_i32_1 = arith.constant 0 : i32
    return %arg0, %c0_i32, %c0_i32_0 : i32, i32, i32
  }
}

</mosaic_0001>

<llo_original>
// kernel: tpu_custom_call.1
$region0: #{tpu_custom_call.1}
  #allocation0 [shape = 'u32[]', space=smem, size = 0x4, offset = 0x4, fixed_abs, tag = 'smem constant byte address 0x4 - core index']
  #allocation1 [shape = 'u32[144,128]{1,0:T(1,128)}', space=vmem, size = 0x12000, scoped, tag = 'internal scratch']
  %s0 = inlined_call_operand.vmem [shape: f32[2,4,256], index: 0, kind: input, shape index: {}]
  %s1 = inlined_call_operand.vmem [shape: bf16[256,50], index: 1, kind: input, shape index: {}]
  %s2 = inlined_call_operand.hbm [shape: f32[2,4,50], index: 2, kind: output, shape index: {}]
  %s3 = sld [smem:[#allocation0]]
  $region49: #{tpu_custom_call.1} parent=0
    _
  %s5 = ssub.s32 1, %s3
  %s6 = scalar_select 0, %s5, %s3
  $region1: #{tpu_custom_call.1} parent=0
    #allocation2 [shape = 'u8[4096]{0}', space=vmem, size = 0x1000, scoped, tag = 'output window, operand 0']
    #allocation3 [shape = 's32[2]{0}', space=sflag, size = 0x8, scoped, tag = 'scoped memory for tpu_custom_call.1']
    %7 = vsyncpa [#allocation3], 0
    %s8 = scalar_lea.sflag [#allocation3], 1
    %9 = vsyncpa %s8, 0
    loop: start=0, step=1, limit=4
    $region2: #{tpu_custom_call.1} parent=1 // loop_pre_header
      _
    $region3: #{tpu_custom_call.1} parent=1 // loop_header
      %s11 = sphi 0, %s15
      %p12 = scmp.ge.s32.totalorder %s11, 4
      %s18 = sphi 0, %s30
      %s19 = sphi 0, %s26
      %s20 = sphi 0, %s18
      %s21 = sphi 0, %s19
      %s22 = sphi 0, %s20
      %s23 = sphi 0, %s21
      %s35 = sphi 0, %s37
      %s38 = sphi 0, %s35
      %s39 = sphi 0, %s38
      %s55 = sphi 0, %s39
      %s61 = sphi 0, %s63
      %s64 = sphi 0, %s61
      %s65 = sphi 0, %s64
      %s81 = sphi 0, %s65
      %s87 = sphi 0, %s89
      %s90 = sphi 0, %s87
      %s91 = sphi 0, %s90
      %s107 = sphi 0, %s91
    $region4: #{tpu_custom_call.1} parent=1 // loop_header_branch
      %14 = sbr.rel (%p12) target = $region8
    $region5: #{tpu_custom_call.1} parent=1 // loop_body
      %s16 = ssub.s32 %s11, 1
      %s17 = ssub.s32 %s11, 2
      %s24 = sadd.s32 1, %s19
      %p25 = scmp.ge.s32.totalorder %s24, 1
      %s26 = scalar_select %p25, 0, %s24
      %s27 = sadd.s32 1, %s18
      %s28 = scalar_select %p25, %s27, %s18
      %p29 = scmp.ge.s32.totalorder %s28, 2
      %s30 = scalar_select %p29, 0, %s28
      %s31 = ssub.s32 %s18, %s30
      %s32 = ssub.s32 %s19, %s26
      %s33 = sor.u32 %s31, %s32
      %p34 = scmp.eq.s32.totalorder %s33, 0
      %s36 = sadd.s32 %s35, 1
      %s37 = scalar_select %p34, %s35, %s36
      %p40 = pneg %p34
      %p41 = scmp.eq.s32.totalorder %s11, 1
      %p42 = por %p40, %p41
      %p43 = scmp.ne.s32.totalorder %s35, %s38
      %p44 = scmp.eq.s32.totalorder %s11, 0
      %p45 = por %p43, %p44
      %p46 = scmp.ne.s32.totalorder %s35, %s38
      %p47 = scmp.eq.s32.totalorder %s16, 1
      %p48 = por %p46, %p47
      %p49 = scmp.ne.s32.totalorder %s38, %s39
      %p50 = scmp.eq.s32.totalorder %s16, 0
      %p51 = por %p49, %p50
      %p52 = scmp.ne.s32.totalorder %s38, %s39
      %p53 = scmp.eq.s32.totalorder %s17, 1
      %p54 = por %p52, %p53
      %p56 = scmp.ne.s32.totalorder %s39, %s55
      %p57 = scmp.eq.s32.totalorder %s17, 0
      %p58 = por %p56, %p57
      %s59 = ssub.s32 %s19, %s26
      %p60 = scmp.eq.s32.totalorder %s59, 0
      %s62 = sadd.s32 %s61, 1
      %s63 = scalar_select %p60, %s61, %s62
      %p66 = pneg %p60
      %p67 = scmp.eq.s32.totalorder %s11, 1
      %p68 = por %p66, %p67
      %p69 = scmp.ne.s32.totalorder %s61, %s64
      %p70 = scmp.eq.s32.totalorder %s11, 0
      %p71 = por %p69, %p70
      %p72 = scmp.ne.s32.totalorder %s61, %s64
      %p73 = scmp.eq.s32.totalorder %s16, 1
      %p74 = por %p72, %p73
      %p75 = scmp.ne.s32.totalorder %s64, %s65
      %p76 = scmp.eq.s32.totalorder %s16, 0
      %p77 = por %p75, %p76
      %p78 = scmp.ne.s32.totalorder %s64, %s65
      %p79 = scmp.eq.s32.totalorder %s17, 1
      %p80 = por %p78, %p79
      %p82 = scmp.ne.s32.totalorder %s65, %s81
      %p83 = scmp.eq.s32.totalorder %s17, 0
      %p84 = por %p82, %p83
      %s85 = ssub.s32 %s18, %s30
      %p86 = scmp.eq.s32.totalorder %s85, 0
      %s88 = sadd.s32 %s87, 1
      %s89 = scalar_select %p86, %s87, %s88
      %p92 = pneg %p86
      %p93 = scmp.eq.s32.totalorder %s11, 1
      %p94 = por %p92, %p93
      %p95 = scmp.ne.s32.totalorder %s87, %s90
      %p96 = scmp.eq.s32.totalorder %s11, 0
      %p97 = por %p95, %p96
      %p98 = scmp.ne.s32.totalorder %s87, %s90
      %p99 = scmp.eq.s32.totalorder %s16, 1
      %p100 = por %p98, %p99
      %p101 = scmp.ne.s32.totalorder %s90, %s91
      %p102 = scmp.eq.s32.totalorder %s16, 0
      %p103 = por %p101, %p102
      %p104 = scmp.ne.s32.totalorder %s90, %s91
      %p105 = scmp.eq.s32.totalorder %s17, 1
      %p106 = por %p104, %p105
      %p108 = scmp.ne.s32.totalorder %s91, %s107
      %p109 = scmp.eq.s32.totalorder %s17, 0
      %p110 = por %p108, %p109
      %p111 = scmp.le.s32.totalorder 1, %s11
      %p112 = scmp.lt.s32.totalorder %s11, 3
      %p113 = pnand %p111, %p112
      %p114 = pneg %p113
      // Predicated region
      $region9: #{tpu_custom_call.1} parent=5 // pred_check
        _
      $region10: #{tpu_custom_call.1} parent=5 // pred_check_branch
        %116 = sbr.rel (%p113) target = $region12
      $region11: #{tpu_custom_call.1} parent=5 // pred_region
        %s117 = ssub.s32 %s11, 1
        // Predicated region
        $region13: #{tpu_custom_call.1} parent=11 // pred_check
          %p118 = pneg %p77
        $region14: #{tpu_custom_call.1} parent=11 // pred_check_branch
          %120 = sbr.rel (%p118) target = $region16
        $region15: #{tpu_custom_call.1} parent=11 // pred_region
          %s121 = smul.u32 32, %s21
          %p122 = scmp.lt.s32.totalorder %s121, 31
          %s123 = scalar_select %p122, %s121, 31
          %s124 = smul.addr %s123, 4
          %s125 = scalar_lea.vmem %s1, %s124
          %s126 = smul.u32 32, %s21
        $region16: #{tpu_custom_call.1} parent=11 // pred_fallthru
          _
      $region12: #{tpu_custom_call.1} parent=5 // pred_fallthru
        _
      %p127 = scmp.lt.s32.totalorder %s11, 2
      // Predicated region
      $region17: #{tpu_custom_call.1} parent=5 // pred_check
        %p128 = pneg %p127
      $region18: #{tpu_custom_call.1} parent=5 // pred_check_branch
        %130 = sbr.rel (%p128) target = $region20
      $region19: #{tpu_custom_call.1} parent=5 // pred_region
        // Predicated region
        $region21: #{tpu_custom_call.1} parent=19 // pred_check
          %p131 = pneg %p45
        $region22: #{tpu_custom_call.1} parent=19 // pred_check_branch
          %133 = sbr.rel (%p131) target = $region24
        $region23: #{tpu_custom_call.1} parent=19 // pred_region
          %s134 = smul.u32 2, %s19
          %p135 = scmp.lt.s32.totalorder %s18, 1
          %s136 = scalar_select %p135, %s18, 1
          %p137 = scmp.lt.s32.totalorder %s134, 1
          %s138 = scalar_select %p137, %s134, 1
          %s139 = smul.addr %s136, 2
          %s140 = sadd.s32 %s138, %s139
          %s141 = smul.addr %s140, 4
          %s142 = scalar_lea.vmem %s0, %s141
          %s143 = smul.u32 2, %s19
        $region24: #{tpu_custom_call.1} parent=19 // pred_fallthru
          _
      $region20: #{tpu_custom_call.1} parent=5 // pred_fallthru
        _
      %p144 = scmp.le.s32.totalorder 1, %s11
      %p145 = scmp.lt.s32.totalorder %s11, 3
      %p146 = pnand %p144, %p145
      %p147 = pneg %p146
      // Predicated region
      $region25: #{tpu_custom_call.1} parent=5 // pred_check
        _
      $region26: #{tpu_custom_call.1} parent=5 // pred_check_branch
        %149 = sbr.rel (%p146) target = $region28
      $region27: #{tpu_custom_call.1} parent=5 // pred_region
        %s150 = ssub.s32 %s11, 1
        %s151 = smul.u32 2, %s21
        %p152 = scmp.lt.s32.totalorder %s20, 1
        %s153 = scalar_select %p152, %s20, 1
        %p154 = scmp.lt.s32.totalorder %s151, 1
        %s155 = scalar_select %p154, %s151, 1
        %s156 = smul.addr %s153, 2
        %s157 = sadd.s32 %s155, %s156
        %s158 = smul.addr %s157, 4
        %s159 = scalar_lea.vmem %s0, %s158
        %p160 = pneg %p51
        %p161 = pneg %p48
        %s162 = smul.u32 32, %s21
        %p163 = scmp.lt.s32.totalorder %s162, 31
        %s164 = scalar_select %p163, %s162, 31
        %s165 = smul.addr %s164, 4
        %s166 = scalar_lea.vmem %s1, %s165
        %p167 = pneg %p77
        %p168 = pneg %p74
        %p169 = pneg %p103
        %p170 = pneg %p100
        %s171 = sand.u32 %s90, 1
        %s172 = scalar_lea.sflag [#allocation3], %s171
        %s173 = sand.u32 %s90, 1
        %s174 = smul.addr %s173, 4
        %s175 = scalar_lea.vmem [#allocation2], %s174
        %s176 = smul.u32 2, %s21
        %p177 = scmp.lt.s32.totalorder %s20, 1
        %s178 = scalar_select %p177, %s20, 1
        %p179 = scmp.lt.s32.totalorder %s176, 1
        %s180 = scalar_select %p179, %s176, 1
        %s181 = smul.addr %s178, 2
        %s182 = sadd.s32 %s180, %s181
        %s183 = smul.addr %s182, 4
        %s184 = scalar_lea.vmem %s0, %s183
        %s185 = smul.u32 2, %s21
        %s186 = smul.u32 32, %s21
        %p187 = scmp.lt.s32.totalorder %s186, 31
        %s188 = scalar_select %p187, %s186, 31
        %s189 = smul.addr %s188, 4
        %s190 = scalar_lea.vmem %s1, %s189
        %s191 = smul.u32 32, %s21
        %v193 = vld [vmem:[%s184] sm:$0xff]
        %v195 = vcombine.high %v193, %v193
        %v197 = vpack.c.bf16 %v193, %v193
        %v198 = vpack.c.bf16 %v195, %v195
        %v199 = vld [vmem:[%s190] sm:$0xf]
        %v200 = vld [vmem:[%s190 + $0x4] sm:$0xf]
        %v201 = vld [vmem:[%s190 + $0x8] sm:$0xf]
        %v202 = vld [vmem:[%s190 + $0xc] sm:$0xf]
        %v203 = vld [vmem:[%s190 + $0x10] sm:$0xf]
        %v204 = vld [vmem:[%s190 + $0x14] sm:$0xf]
        %v205 = vld [vmem:[%s190 + $0x18] sm:$0xf]
        %v206 = vld [vmem:[%s190 + $0x1c] sm:$0xf]
        %v207 = vld [vmem:[%s190 + $0x20] sm:$0xf]
        %v208 = vld [vmem:[%s190 + $0x24] sm:$0xf]
        %v209 = vld [vmem:[%s190 + $0x28] sm:$0xf]
        %v210 = vld [vmem:[%s190 + $0x2c] sm:$0xf]
        %v211 = vld [vmem:[%s190 + $0x30] sm:$0xf]
        %v212 = vld [vmem:[%s190 + $0x34] sm:$0xf]
        %v213 = vld [vmem:[%s190 + $0x38] sm:$0xf]
        %v214 = vld [vmem:[%s190 + $0x3c] sm:$0xf]
        %v215 = vld [vmem:[%s190 + $0x40] sm:$0xf]
        %v216 = vld [vmem:[%s190 + $0x44] sm:$0xf]
        %v217 = vld [vmem:[%s190 + $0x48] sm:$0xf]
        %v218 = vld [vmem:[%s190 + $0x4c] sm:$0xf]
        %v219 = vld [vmem:[%s190 + $0x50] sm:$0xf]
        %v220 = vld [vmem:[%s190 + $0x54] sm:$0xf]
        %v221 = vld [vmem:[%s190 + $0x58] sm:$0xf]
        %v222 = vld [vmem:[%s190 + $0x5c] sm:$0xf]
        %v223 = vld [vmem:[%s190 + $0x60] sm:$0xf]
        %v224 = vld [vmem:[%s190 + $0x64] sm:$0xf]
        %v225 = vld [vmem:[%s190 + $0x68] sm:$0xf]
        %v226 = vld [vmem:[%s190 + $0x6c] sm:$0xf]
        %v227 = vld [vmem:[%s190 + $0x70] sm:$0xf]
        %v228 = vld [vmem:[%s190 + $0x74] sm:$0xf]
        %v229 = vld [vmem:[%s190 + $0x78] sm:$0xf]
        %v230 = vld [vmem:[%s190 + $0x7c] sm:$0xf]
        %v263 = vunpack.c.l.b16 %v199
        %v264 = vunpack.c.l.b16 %v200
        %v265 = vunpack.c.l.b16 %v201
        %v266 = vunpack.c.l.b16 %v202
        %v267 = vunpack.c.l.b16 %v203
        %v268 = vunpack.c.l.b16 %v204
        %v269 = vunpack.c.l.b16 %v205
        %v270 = vunpack.c.l.b16 %v206
        %v271 = vunpack.c.l.b16 %v207
        %v272 = vunpack.c.l.b16 %v208
        %v273 = vunpack.c.l.b16 %v209
        %v274 = vunpack.c.l.b16 %v210
        %v275 = vunpack.c.l.b16 %v211
        %v276 = vunpack.c.l.b16 %v212
        %v277 = vunpack.c.l.b16 %v213
        %v278 = vunpack.c.l.b16 %v214
        %v279 = vunpack.c.l.b16 %v215
        %v280 = vunpack.c.l.b16 %v216
        %v281 = vunpack.c.l.b16 %v217
        %v282 = vunpack.c.l.b16 %v218
        %v283 = vunpack.c.l.b16 %v219
        %v284 = vunpack.c.l.b16 %v220
        %v285 = vunpack.c.l.b16 %v221
        %v286 = vunpack.c.l.b16 %v222
        %v287 = vunpack.c.l.b16 %v223
        %v288 = vunpack.c.l.b16 %v224
        %v289 = vunpack.c.l.b16 %v225
        %v290 = vunpack.c.l.b16 %v226
        %v291 = vunpack.c.l.b16 %v227
        %v292 = vunpack.c.l.b16 %v228
        %v293 = vunpack.c.l.b16 %v229
        %v294 = vunpack.c.l.b16 %v230
        %v295 = vpack.c.b16 %v264, %v263
        %v296 = vpack.c.b16 %v266, %v265
        %v297 = vpack.c.b16 %v268, %v267
        %v298 = vpack.c.b16 %v270, %v269
        %v299 = vpack.c.b16 %v272, %v271
        %v300 = vpack.c.b16 %v274, %v273
        %v301 = vpack.c.b16 %v276, %v275
        %v302 = vpack.c.b16 %v278, %v277
        %v303 = vpack.c.b16 %v280, %v279
        %v304 = vpack.c.b16 %v282, %v281
        %v305 = vpack.c.b16 %v284, %v283
        %v306 = vpack.c.b16 %v286, %v285
        %v307 = vpack.c.b16 %v288, %v287
        %v308 = vpack.c.b16 %v290, %v289
        %v309 = vpack.c.b16 %v292, %v291
        %v310 = vpack.c.b16 %v294, %v293
        %327 = vmatprep.subr.bf16.mxu0 0
        %328 = vmatpush1.bf16.msra.mxu0 %v295
        %329 = vmatprep.subr.bf16.mxu0 0
        %330 = vmatpush1.bf16.msra.mxu0 %v296
        %331 = vmatprep.subr.bf16.mxu0 0
        %332 = vmatpush1.bf16.msra.mxu0 %v297
        %333 = vmatprep.subr.bf16.mxu0 0
        %334 = vmatpush1.bf16.msra.mxu0 %v298
        %335 = vmatprep.subr.bf16.mxu0 0
        %336 = vmatpush1.bf16.msra.mxu0 %v299
        %337 = vmatprep.subr.bf16.mxu0 0
        %338 = vmatpush1.bf16.msra.mxu0 %v300
        %339 = vmatprep.subr.bf16.mxu0 0
        %340 = vmatpush1.bf16.msra.mxu0 %v301
        %341 = vmatprep.subr.bf16.mxu0 0
        %342 = vmatpush1.bf16.msra.mxu0 %v302
        %343 = vmatprep.subr.bf16.mxu0 0
        %344 = vmatpush1.bf16.msra.mxu0 %v303
        %345 = vmatprep.subr.bf16.mxu0 0
        %346 = vmatpush1.bf16.msra.mxu0 %v304
        %347 = vmatprep.subr.bf16.mxu0 0
        %348 = vmatpush1.bf16.msra.mxu0 %v305
        %349 = vmatprep.subr.bf16.mxu0 0
        %350 = vmatpush1.bf16.msra.mxu0 %v306
        %351 = vmatprep.subr.bf16.mxu0 0
        %352 = vmatpush1.bf16.msra.mxu0 %v307
        %353 = vmatprep.subr.bf16.mxu0 0
        %354 = vmatpush1.bf16.msra.mxu0 %v308
        %355 = vmatprep.subr.bf16.mxu0 0
        %356 = vmatpush1.bf16.msra.mxu0 %v309
        %357 = vmatprep.subr.bf16.mxu0 0
        %358 = vmatpush1.bf16.msra.mxu0 %v310
        %359 = vmatprep.mubr.bf16.mxu0 %v198
        %360 = vmatmul.mubr.bf16.gmra.mrb[0].mxu0 %v197
        %v361 = vpop.f32.mrb[0].mxu0
        %v362 = vadd.f32 0.0, %v361
        %v363 = vpop.f32.mrb[0].mxu0
        %v364 = vpop.f32.mrb[0].mxu0
        %v365 = vpop.f32.mrb[0].mxu0
        %366 = vdwg.mxu0
        %p367 = scmp.eq.s32.totalorder %s21, 0
        // Predicated region
        $region29: #{tpu_custom_call.1} parent=27 // pred_check
          %p368 = pneg %p367
        $region30: #{tpu_custom_call.1} parent=27 // pred_check_branch
          %370 = sbr.rel (%p368) target = $region32
        $region31: #{tpu_custom_call.1} parent=27 // pred_region
          %vm371 = vcmask 404480
          %372 = vst.msk [vmem:[%s175] sm:$0xf] %vm371, %v362
        $region32: #{tpu_custom_call.1} parent=27 // pred_fallthru
          _
        %p373 = scmp.gt.s32.totalorder %s21, 0
        // Predicated region
        $region33: #{tpu_custom_call.1} parent=27 // pred_check
          %p374 = pneg %p373
        $region34: #{tpu_custom_call.1} parent=27 // pred_check_branch
          %376 = sbr.rel (%p374) target = $region36
        $region35: #{tpu_custom_call.1} parent=27 // pred_region
          %v377 = vld [vmem:[%s175] sm:$0xf]
          %v378 = vadd.f32 %v377, %v362
          %vm379 = vcmask 404480
          %380 = vst.msk [vmem:[%s175] sm:$0xf] %vm379, %v378
        $region36: #{tpu_custom_call.1} parent=27 // pred_fallthru
          _
        %s381 = sand.u32 %s90, 1
        %s382 = scalar_lea.sflag [#allocation3], %s381
        %s383 = sand.u32 %s90, 1
        %s384 = smul.addr %s383, 4
        %s385 = scalar_lea.vmem [#allocation2], %s384
        // Predicated region
        $region37: #{tpu_custom_call.1} parent=27 // pred_check
          %p386 = pneg %p100
        $region38: #{tpu_custom_call.1} parent=27 // pred_check_branch
          %388 = sbr.rel (%p386) target = $region40
        $region39: #{tpu_custom_call.1} parent=27 // pred_region
          %s390 = ssub.s32 64, 64
          %391 = vsyncadd %s382, %s390
          %s392 = smul.addr %s20, 64
          %s393 = scalar_lea.hbm %s2, %s392
          %s395 = sshll.u32 %s385, 4
          %s396 = int_to_ptr.vmem [resolvable:$true] %s395
          %398 = dma.vmem_to_hbm [thread:$0]  %s396, 64, %s393, %s382
        $region40: #{tpu_custom_call.1} parent=27 // pred_fallthru
          _
      $region28: #{tpu_custom_call.1} parent=5 // pred_fallthru
        _
      %p399 = scmp.le.s32.totalorder 2, %s11
      // Predicated region
      $region41: #{tpu_custom_call.1} parent=5 // pred_check
        %p400 = pneg %p399
      $region42: #{tpu_custom_call.1} parent=5 // pred_check_branch
        %402 = sbr.rel (%p400) target = $region44
      $region43: #{tpu_custom_call.1} parent=5 // pred_region
        %s403 = ssub.s32 %s11, 2
        // Predicated region
        $region45: #{tpu_custom_call.1} parent=43 // pred_check
          %p404 = pneg %p106
        $region46: #{tpu_custom_call.1} parent=43 // pred_check_branch
          %406 = sbr.rel (%p404) target = $region48
        $region47: #{tpu_custom_call.1} parent=43 // pred_region
          %s407 = sand.u32 %s91, 1
          %s408 = scalar_lea.sflag [#allocation3], %s407
          %s409 = sand.u32 %s91, 1
          %s410 = smul.addr %s409, 4
          %s411 = scalar_lea.vmem [#allocation2], %s410
          %412 = dma.done %s408, 64
        $region48: #{tpu_custom_call.1} parent=43 // pred_fallthru
          _
      $region44: #{tpu_custom_call.1} parent=5 // pred_fallthru
        _
    $region6: #{tpu_custom_call.1} parent=1 // loop_footer
      %s15 = sadd.s32 1, %s11
    $region7: #{tpu_custom_call.1} parent=1 // loop_footer_branch
      %10 = sbr.rel target = $region3
    $region8: #{tpu_custom_call.1} parent=1 // loop_exit
      _
    %413 = vsyncpa [#allocation3], 1
    %s414 = scalar_lea.sflag [#allocation3], 1
    %415 = vsyncpa %s414, 1

</llo_original>
